<compile_context>
chip_gen: v6e
topology: v6e:2x2x1
jax: 0.10.0
libtpu: 0.0.40
codegen_flags: <defaults>
</compile_context>

<pallas_src>
import math

import jax
import jax.numpy as jnp
from jax.experimental import pallas as pl
from jax.experimental.pallas import tpu as pltpu


def _gelu_exact(v):
    # PyTorch nn.GELU() default: exact erf formulation.
    return 0.5 * v * (1.0 + jax.lax.erf(v * (1.0 / math.sqrt(2.0))))


def pacman_eval_kernel(x_ref, w1_ref, b1_ref, w2_ref, b2_ref, w3_ref, b3_ref,
                       o_ref):
    x = x_ref[...].astype(jnp.float32)                        # (TB, D)

    # ---- LayerNorm over features (biased variance, eps=1e-5). The affine
    # (gamma/beta) has been folded into w1/b1 by the wrapper (eval mode).
    mean = jnp.mean(x, axis=-1, keepdims=True)
    ctr = x - mean
    var = jnp.mean(ctr * ctr, axis=-1, keepdims=True)
    xn = ctr * jax.lax.rsqrt(var + 1e-5)                      # (TB, D)

    # ---- l1 -> GELU (MXU) ----
    h1 = jnp.dot(xn, w1_ref[...], preferred_element_type=jnp.float32)
    h1 = _gelu_exact(h1 + b1_ref[...])                        # (TB, 64)

    # ---- l2 -> GELU (MXU) ----
    h2 = jnp.dot(h1, w2_ref[...], preferred_element_type=jnp.float32)
    h2 = _gelu_exact(h2 + b2_ref[...])                        # (TB, 32)

    # ---- l3 (32 -> 1): lane reduce to a (TB,1) column, then transpose only
    # that column (not the whole (TB,32) tile) -> lane-dense (1, TB) row.
    h3 = jnp.sum(h2 * w3_ref[...], axis=-1, keepdims=True).T  # (1, TB)
    h3 = _gelu_exact(h3 + b3_ref[...])                        # (1, TB)

    # ---- Sigmoid, full-width (unmasked) store ----
    o_ref[...] = (1.0 / (1.0 + jnp.exp(-h3))).astype(o_ref.dtype)


def _round_up(n, m):
    return ((n + m - 1) // m) * m


def pacman_eval_forward(x, params):
    """x: (B, H, W) (any float dtype). Returns (B, 1) float32."""
    B = x.shape[0]
    D = 1
    for d in x.shape[1:]:
        D *= d
    x2d = x.reshape(B, D)                      # keep NATIVE dtype (HBM-bound)
    itemsize = int(x2d.dtype.itemsize)

    # ---- Generation-aware sizing ----
    try:
        vmem_capacity = int(pltpu.get_tpu_info().vmem_capacity_bytes)
    except Exception:
        vmem_capacity = 64 * 1024 * 1024       # conservative (v7x-sized)
    small_vmem = vmem_capacity <= 64 * 1024 * 1024
    max_tile_bytes = (8 if small_vmem else 16) * 1024 * 1024

    # Batch tile sized by bytes, multiple of 8 sublanes.
    b8 = _round_up(B, 8)
    tb = max(8, ((max_tile_bytes // max(D * itemsize, 1)) // 8) * 8)
    tb = min(tb, b8)
    if b8 >= 16:
        # Keep >=2 grid tiles so the "parallel" axis can use both v7x cores.
        tb = min(tb, _round_up((b8 + 1) // 2, 8))
    tb = max(8, tb)

    padded_b = _round_up(B, tb)
    if padded_b != B:
        # Pad batch so every tile is full (no OOB reads/writes on VMEM refs).
        x2d = jnp.pad(x2d, ((0, padded_b - B), (0, 0)))
    num_tiles = padded_b // tb

    # ---- Fold LayerNorm affine into l1 (eval mode, static weights) ----
    gamma = params["ln_g"].reshape(D, 1).astype(jnp.float32)
    beta = params["ln_b"].reshape(1, D).astype(jnp.float32)
    w1f = params["w1"].astype(jnp.float32)
    w1 = w1f * gamma                                           # (D, 64)
    b1 = params["b1"].astype(jnp.float32) + beta @ w1f         # (1, 64)
    w2 = params["w2"].astype(jnp.float32)                      # (64, 32)
    b2 = params["b2"].astype(jnp.float32)                      # (1, 32)
    w3 = params["w3"].astype(jnp.float32).reshape(1, -1)       # (1, 32) row
    b3 = params["b3"].astype(jnp.float32).reshape(1, 1)        # (1, 1)

    def lanes(n):
        return _round_up(max(n, 1), 128)

    def subs(n):
        return _round_up(max(n, 1), 8)

    def run(single_buffer_consts):
        def const(shape):
            # Full-array block, constant index -> DMA'd once, stays resident.
            if single_buffer_consts:
                return pl.BlockSpec(shape, lambda i: (0, 0),
                                    pipeline_mode=pl.Buffered(1))
            return pl.BlockSpec(shape, lambda i: (0, 0))

        in_specs = [
            pl.BlockSpec((tb, D), lambda i: (i, 0)),           # x: pipelined
            const((D, 64)), const((1, 64)),                    # l1 (LN folded)
            const((64, 32)), const((1, 32)),                   # l2
            const((1, 32)), const((1, 1)),                     # l3 row + bias
        ]
        # Lane-dense output: one (1, tb) row per tile; tile axis squeezed so
        # the block's last two dims equal the full array dims (always legal).
        out_spec = pl.BlockSpec((None, 1, tb), lambda i: (i, 0, 0))

        # ---- Honest VMEM budget (lane/sublane padding included) ----
        nbuf = 1 if single_buffer_consts else 2
        param_bytes = 4 * nbuf * (
            subs(D) * lanes(64) + subs(1) * lanes(64)          # w1, b1
            + subs(64) * lanes(32) + subs(1) * lanes(32)       # w2, b2
            + subs(1) * lanes(32) + subs(1) * lanes(1))        # w3, b3
        x_bytes = 2 * tb * lanes(D) * itemsize                 # double-buffered
        out_bytes = 2 * subs(1) * lanes(tb) * 4
        est = x_bytes + param_bytes + out_bytes + (4 << 20)    # compiler slack
        cap = (vmem_capacity * 3) // 4                         # 48 MiB on v7x
        vmem_limit = int(min(cap, max(32 << 20, est)))

        return pl.pallas_call(
            pacman_eval_kernel,
            out_shape=jax.ShapeDtypeStruct((num_tiles, 1, tb), jnp.float32),
            grid=(num_tiles,),
            in_specs=in_specs,
            out_specs=out_spec,
            compiler_params=pltpu.CompilerParams(
                dimension_semantics=("parallel",),
                vmem_limit_bytes=vmem_limit,
            ),
        )(x2d, w1, b1, w2, b2, w3, b3)

    try:
        out = run(True)
    except Exception:
        # Fallback if pipeline_mode=pl.Buffered(1) is rejected by this jax.
        out = run(False)

    return out.reshape(padded_b, 1)[:B]


def init_params(key, input_size):
    """Deterministic init mimicking nn.Linear / nn.LayerNorm shapes."""
    D = input_size[0] * input_size[1]
    ks = jax.random.split(key, 6)

    def linear(kw, kb, fan_in, fan_out):
        # PyTorch nn.Linear default: U(-1/sqrt(fan_in), 1/sqrt(fan_in)).
        bound = 1.0 / math.sqrt(fan_in)
        w = jax.random.uniform(kw, (fan_in, fan_out), jnp.float32, -bound, bound)
        b = jax.random.uniform(kb, (1, fan_out), jnp.float32, -bound, bound)
        return w, b

    w1, b1 = linear(ks[0], ks[1], D, 64)
    w2, b2 = linear(ks[2], ks[3], 64, 32)
    w3, b3 = linear(ks[4], ks[5], 32, 1)
    return {
        "ln_g": jnp.ones((1, D), jnp.float32),
        "ln_b": jnp.zeros((1, D), jnp.float32),
        "w1": w1, "b1": b1,
        "w2": w2, "b2": b2,
        "w3": w3, "b3": b3,
    }


if __name__ == "__main__":
    key = jax.random.PRNGKey(0)
    k_x, k_p = jax.random.split(key)

    input_size = (16, 16)         # H, W  -> D = 256 features
    B = 2
    x = jax.random.normal(k_x, (B, input_size[0], input_size[1]), jnp.float32)
    params = init_params(k_p, input_size)

    out = pacman_eval_forward(x, params)
    out = jax.block_until_ready(out)
    assert out.shape == (B, 1) and out.dtype == jnp.float32
    assert bool(jnp.all(jnp.isfinite(out)))
    print("KERNEL_OK")
</pallas_src>

<mosaic_0001>
module attributes {stable_mosaic.version = 11 : i64} {
  func.func @pacman_eval_kernel(%arg0: i32, %arg1: memref<8x256xf32, #tpu.memory_space<vmem>>, %arg2: memref<256x64xf32, #tpu.memory_space<vmem>>, %arg3: memref<1x64xf32, #tpu.memory_space<vmem>>, %arg4: memref<64x32xf32, #tpu.memory_space<vmem>>, %arg5: memref<1x32xf32, #tpu.memory_space<vmem>>, %arg6: memref<1x32xf32, #tpu.memory_space<vmem>>, %arg7: memref<1x1xf32, #tpu.memory_space<vmem>>, %arg8: memref<1x1x8xf32, #tpu.memory_space<vmem>>) attributes {dimension_semantics = [#tpu.dimension_semantics<parallel>], iteration_bounds = array<i64: 1>, scalar_prefetch = 0 : i64, scratch_operands = 0 : i64, tpu.core_type = #tpu.core_type<tc>, window_params = [{transform_indices = @transform_0, window_bounds = array<i64: 8, 256>}, {pipeline_mode = #tpu.pipeline_mode<synchronous>, transform_indices = @transform_1, window_bounds = array<i64: 256, 64>}, {pipeline_mode = #tpu.pipeline_mode<synchronous>, transform_indices = @transform_2, window_bounds = array<i64: 1, 64>}, {pipeline_mode = #tpu.pipeline_mode<synchronous>, transform_indices = @transform_3, window_bounds = array<i64: 64, 32>}, {pipeline_mode = #tpu.pipeline_mode<synchronous>, transform_indices = @transform_4, window_bounds = array<i64: 1, 32>}, {pipeline_mode = #tpu.pipeline_mode<synchronous>, transform_indices = @transform_5, window_bounds = array<i64: 1, 32>}, {pipeline_mode = #tpu.pipeline_mode<synchronous>, transform_indices = @transform_6, window_bounds = array<i64: 1, 1>}, {transform_indices = @transform_7, window_bounds = array<i64: 1, 1, 8>}]} {
    %c0 = arith.constant 0 : index
    %c0_0 = arith.constant 0 : index
    %0 = vector.load %arg1[%c0, %c0_0] : memref<8x256xf32, #tpu.memory_space<vmem>>, vector<8x256xf32>
    %cst = arith.constant dense<0.000000e+00> : vector<8xf32>
    %1 = vector.multi_reduction <add>, %0, %cst [1] : vector<8x256xf32> to vector<8xf32>
    %2 = vector.shape_cast %1 : vector<8xf32> to vector<8x1xf32>
    %cst_1 = arith.constant 2.560000e+02 : f32
    %3 = vector.broadcast %cst_1 : f32 to vector<8x1xf32>
    %4 = arith.divf %2, %3 : vector<8x1xf32>
    %5 = vector.broadcast %4 : vector<8x1xf32> to vector<8x256xf32>
    %6 = arith.subf %0, %5 : vector<8x256xf32>
    %7 = arith.mulf %6, %6 : vector<8x256xf32>
    %cst_2 = arith.constant dense<0.000000e+00> : vector<8xf32>
    %8 = vector.multi_reduction <add>, %7, %cst_2 [1] : vector<8x256xf32> to vector<8xf32>
    %9 = vector.shape_cast %8 : vector<8xf32> to vector<8x1xf32>
    %cst_3 = arith.constant 2.560000e+02 : f32
    %10 = vector.broadcast %cst_3 : f32 to vector<8x1xf32>
    %11 = arith.divf %9, %10 : vector<8x1xf32>
    %cst_4 = arith.constant 9.99999974E-6 : f32
    %12 = vector.broadcast %cst_4 : f32 to vector<8x1xf32>
    %13 = arith.addf %11, %12 : vector<8x1xf32>
    %14 = math.rsqrt %13 : vector<8x1xf32>
    %15 = vector.broadcast %14 : vector<8x1xf32> to vector<8x256xf32>
    %16 = arith.mulf %6, %15 : vector<8x256xf32>
    %c0_5 = arith.constant 0 : index
    %c0_6 = arith.constant 0 : index
    %17 = vector.load %arg2[%c0_5, %c0_6] : memref<256x64xf32, #tpu.memory_space<vmem>>, vector<256x64xf32>
    %cst_7 = arith.constant dense<0.000000e+00> : vector<8x64xf32>
    %18 = tpu.matmul %16, %17, %cst_7 {dimension_numbers = #tpu.dot_dimension_numbers<[1], [0], [0], [1], [0, 0, 1, 1], [], []>} : vector<8x256xf32>, vector<256x64xf32>, vector<8x64xf32> -> vector<8x64xf32>
    %c0_8 = arith.constant 0 : index
    %c0_9 = arith.constant 0 : index
    %19 = vector.load %arg3[%c0_8, %c0_9] : memref<1x64xf32, #tpu.memory_space<vmem>>, vector<1x64xf32>
    %20 = vector.broadcast %19 : vector<1x64xf32> to vector<8x64xf32>
    %21 = arith.addf %18, %20 : vector<8x64xf32>
    %cst_10 = arith.constant 5.000000e-01 : f32
    %22 = vector.broadcast %cst_10 : f32 to vector<8x64xf32>
    %23 = arith.mulf %22, %21 : vector<8x64xf32>
    %cst_11 = arith.constant 0.707106769 : f32
    %24 = vector.broadcast %cst_11 : f32 to vector<8x64xf32>
    %25 = arith.mulf %21, %24 : vector<8x64xf32>
    %26 = math.erf %25 : vector<8x64xf32>
    %cst_12 = arith.constant 1.000000e+00 : f32
    %27 = vector.broadcast %cst_12 : f32 to vector<8x64xf32>
    %28 = arith.addf %27, %26 : vector<8x64xf32>
    %29 = arith.mulf %23, %28 : vector<8x64xf32>
    %c0_13 = arith.constant 0 : index
    %c0_14 = arith.constant 0 : index
    %30 = vector.load %arg4[%c0_13, %c0_14] : memref<64x32xf32, #tpu.memory_space<vmem>>, vector<64x32xf32>
    %cst_15 = arith.constant dense<0.000000e+00> : vector<8x32xf32>
    %31 = tpu.matmul %29, %30, %cst_15 {dimension_numbers = #tpu.dot_dimension_numbers<[1], [0], [0], [1], [0, 0, 1, 1], [], []>} : vector<8x64xf32>, vector<64x32xf32>, vector<8x32xf32> -> vector<8x32xf32>
    %c0_16 = arith.constant 0 : index
    %c0_17 = arith.constant 0 : index
    %32 = vector.load %arg5[%c0_16, %c0_17] : memref<1x32xf32, #tpu.memory_space<vmem>>, vector<1x32xf32>
    %33 = vector.broadcast %32 : vector<1x32xf32> to vector<8x32xf32>
    %34 = arith.addf %31, %33 : vector<8x32xf32>
    %cst_18 = arith.constant 5.000000e-01 : f32
    %35 = vector.broadcast %cst_18 : f32 to vector<8x32xf32>
    %36 = arith.mulf %35, %34 : vector<8x32xf32>
    %cst_19 = arith.constant 0.707106769 : f32
    %37 = vector.broadcast %cst_19 : f32 to vector<8x32xf32>
    %38 = arith.mulf %34, %37 : vector<8x32xf32>
    %39 = math.erf %38 : vector<8x32xf32>
    %cst_20 = arith.constant 1.000000e+00 : f32
    %40 = vector.broadcast %cst_20 : f32 to vector<8x32xf32>
    %41 = arith.addf %40, %39 : vector<8x32xf32>
    %42 = arith.mulf %36, %41 : vector<8x32xf32>
    %c0_21 = arith.constant 0 : index
    %c0_22 = arith.constant 0 : index
    %43 = vector.load %arg6[%c0_21, %c0_22] : memref<1x32xf32, #tpu.memory_space<vmem>>, vector<1x32xf32>
    %44 = vector.broadcast %43 : vector<1x32xf32> to vector<8x32xf32>
    %45 = arith.mulf %42, %44 : vector<8x32xf32>
    %cst_23 = arith.constant dense<0.000000e+00> : vector<8xf32>
    %46 = vector.multi_reduction <add>, %45, %cst_23 [1] : vector<8x32xf32> to vector<8xf32>
    %47 = vector.shape_cast %46 : vector<8xf32> to vector<8x1xf32>
    %48 = tpu.transpose %47, [1, 0] : vector<8x1xf32> -> vector<1x8xf32>
    %c0_24 = arith.constant 0 : index
    %c0_25 = arith.constant 0 : index
    %49 = vector.load %arg7[%c0_24, %c0_25] : memref<1x1xf32, #tpu.memory_space<vmem>>, vector<1x1xf32>
    %50 = vector.broadcast %49 : vector<1x1xf32> to vector<1x8xf32>
    %51 = arith.addf %48, %50 : vector<1x8xf32>
    %cst_26 = arith.constant 5.000000e-01 : f32
    %52 = vector.broadcast %cst_26 : f32 to vector<1x8xf32>
    %53 = arith.mulf %52, %51 : vector<1x8xf32>
    %cst_27 = arith.constant 0.707106769 : f32
    %54 = vector.broadcast %cst_27 : f32 to vector<1x8xf32>
    %55 = arith.mulf %51, %54 : vector<1x8xf32>
    %56 = math.erf %55 : vector<1x8xf32>
    %cst_28 = arith.constant 1.000000e+00 : f32
    %57 = vector.broadcast %cst_28 : f32 to vector<1x8xf32>
    %58 = arith.addf %57, %56 : vector<1x8xf32>
    %59 = arith.mulf %53, %58 : vector<1x8xf32>
    %cst_29 = arith.constant 0.000000e+00 : f32
    %60 = vector.broadcast %cst_29 : f32 to vector<1x8xf32>
    %61 = arith.subf %60, %59 : vector<1x8xf32>
    %62 = math.exp %61 : vector<1x8xf32>
    %cst_30 = arith.constant 1.000000e+00 : f32
    %63 = vector.broadcast %cst_30 : f32 to vector<1x8xf32>
    %64 = arith.addf %63, %62 : vector<1x8xf32>
    %cst_31 = arith.constant 1.000000e+00 : f32
    %65 = vector.broadcast %cst_31 : f32 to vector<1x8xf32>
    %66 = arith.divf %65, %64 : vector<1x8xf32>
    %c0_32 = arith.constant 0 : index
    %c0_33 = arith.constant 0 : index
    %c0_34 = arith.constant 0 : index
    %67 = vector.load %arg8[%c0_32, %c0_33, %c0_34] : memref<1x1x8xf32, #tpu.memory_space<vmem>>, vector<1x1x8xf32>
    %68 = vector.shape_cast %67 : vector<1x1x8xf32> to vector<1x8xf32>
    %69 = vector.shape_cast %66 : vector<1x8xf32> to vector<1x1x8xf32>
    tpu.vector_store %arg8[%c0_32, %c0_33, %c0_34], %69 {strides = array<i32>} : memref<1x1x8xf32, #tpu.memory_space<vmem>>, vector<1x1x8xf32>,
    return
  }
  func.func @transform_0(%arg0: i32) -> (i32, i32) {
    %c0_i32 = arith.constant 0 : i32
    %c0_i32_0 = arith.constant 0 : i32
    return %arg0, %c0_i32 : i32, i32
  }
  func.func @transform_1(%arg0: i32) -> (i32, i32) {
    %c0_i32 = arith.constant 0 : i32
    %c0_i32_0 = arith.constant 0 : i32
    %c0_i32_1 = arith.constant 0 : i32
    return %c0_i32, %c0_i32_0 : i32, i32
  }
  func.func @transform_2(%arg0: i32) -> (i32, i32) {
    %c0_i32 = arith.constant 0 : i32
    %c0_i32_0 = arith.constant 0 : i32
    %c0_i32_1 = arith.constant 0 : i32
    return %c0_i32, %c0_i32_0 : i32, i32
  }
  func.func @transform_3(%arg0: i32) -> (i32, i32) {
    %c0_i32 = arith.constant 0 : i32
    %c0_i32_0 = arith.constant 0 : i32
    %c0_i32_1 = arith.constant 0 : i32
    return %c0_i32, %c0_i32_0 : i32, i32
  }
  func.func @transform_4(%arg0: i32) -> (i32, i32) {
    %c0_i32 = arith.constant 0 : i32
    %c0_i32_0 = arith.constant 0 : i32
    %c0_i32_1 = arith.constant 0 : i32
    return %c0_i32, %c0_i32_0 : i32, i32
  }
  func.func @transform_5(%arg0: i32) -> (i32, i32) {
    %c0_i32 = arith.constant 0 : i32
    %c0_i32_0 = arith.constant 0 : i32
    %c0_i32_1 = arith.constant 0 : i32
    return %c0_i32, %c0_i32_0 : i32, i32
  }
  func.func @transform_6(%arg0: i32) -> (i32, i32) {
    %c0_i32 = arith.constant 0 : i32
    %c0_i32_0 = arith.constant 0 : i32
    %c0_i32_1 = arith.constant 0 : i32
    return %c0_i32, %c0_i32_0 : i32, i32
  }
  func.func @transform_7(%arg0: i32) -> (i32, i32, i32) {
    %c0_i32 = arith.constant 0 : i32
    %c0_i32_0 = arith.constant 0 : i32
    %c0_i32_1 = arith.constant 0 : i32
    return %arg0, %c0_i32, %c0_i32_0 : i32, i32, i32
  }
}

module attributes {stable_mosaic.version = 11 : i64} {
  func.func @pacman_eval_kernel(%arg0: i32, %arg1: memref<8x256xf32, #tpu.memory_space<vmem>>, %arg2: memref<256x64xf32, #tpu.memory_space<vmem>>, %arg3: memref<1x64xf32, #tpu.memory_space<vmem>>, %arg4: memref<64x32xf32, #tpu.memory_space<vmem>>, %arg5: memref<1x32xf32, #tpu.memory_space<vmem>>, %arg6: memref<1x32xf32, #tpu.memory_space<vmem>>, %arg7: memref<1x1xf32, #tpu.memory_space<vmem>>, %arg8: memref<1x1x8xf32, #tpu.memory_space<vmem>>) attributes {dimension_semantics = [#tpu.dimension_semantics<parallel>], iteration_bounds = array<i64: 1>, scalar_prefetch = 0 : i64, scratch_operands = 0 : i64, tpu.core_type = #tpu.core_type<tc>, window_params = [{transform_indices = @transform_0, window_bounds = array<i64: 8, 256>}, {pipeline_mode = #tpu.pipeline_mode<synchronous>, transform_indices = @transform_1, window_bounds = array<i64: 256, 64>}, {pipeline_mode = #tpu.pipeline_mode<synchronous>, transform_indices = @transform_2, window_bounds = array<i64: 1, 64>}, {pipeline_mode = #tpu.pipeline_mode<synchronous>, transform_indices = @transform_3, window_bounds = array<i64: 64, 32>}, {pipeline_mode = #tpu.pipeline_mode<synchronous>, transform_indices = @transform_4, window_bounds = array<i64: 1, 32>}, {pipeline_mode = #tpu.pipeline_mode<synchronous>, transform_indices = @transform_5, window_bounds = array<i64: 1, 32>}, {pipeline_mode = #tpu.pipeline_mode<synchronous>, transform_indices = @transform_6, window_bounds = array<i64: 1, 1>}, {transform_indices = @transform_7, window_bounds = array<i64: 1, 1, 8>}]} {
    %c0 = arith.constant 0 : index
    %c0_0 = arith.constant 0 : index
    %0 = vector.load %arg1[%c0, %c0_0] : memref<8x256xf32, #tpu.memory_space<vmem>>, vector<8x256xf32>
    %cst = arith.constant dense<0.000000e+00> : vector<8xf32>
    %1 = vector.multi_reduction <add>, %0, %cst [1] : vector<8x256xf32> to vector<8xf32>
    %2 = vector.shape_cast %1 : vector<8xf32> to vector<8x1xf32>
    %cst_1 = arith.constant 2.560000e+02 : f32
    %3 = vector.broadcast %cst_1 : f32 to vector<8x1xf32>
    %4 = arith.divf %2, %3 : vector<8x1xf32>
    %5 = vector.broadcast %4 : vector<8x1xf32> to vector<8x256xf32>
    %6 = arith.subf %0, %5 : vector<8x256xf32>
    %7 = arith.mulf %6, %6 : vector<8x256xf32>
    %cst_2 = arith.constant dense<0.000000e+00> : vector<8xf32>
    %8 = vector.multi_reduction <add>, %7, %cst_2 [1] : vector<8x256xf32> to vector<8xf32>
    %9 = vector.shape_cast %8 : vector<8xf32> to vector<8x1xf32>
    %cst_3 = arith.constant 2.560000e+02 : f32
    %10 = vector.broadcast %cst_3 : f32 to vector<8x1xf32>
    %11 = arith.divf %9, %10 : vector<8x1xf32>
    %cst_4 = arith.constant 9.99999974E-6 : f32
    %12 = vector.broadcast %cst_4 : f32 to vector<8x1xf32>
    %13 = arith.addf %11, %12 : vector<8x1xf32>
    %14 = math.rsqrt %13 : vector<8x1xf32>
    %15 = vector.broadcast %14 : vector<8x1xf32> to vector<8x256xf32>
    %16 = arith.mulf %6, %15 : vector<8x256xf32>
    %c0_5 = arith.constant 0 : index
    %c0_6 = arith.constant 0 : index
    %17 = vector.load %arg2[%c0_5, %c0_6] : memref<256x64xf32, #tpu.memory_space<vmem>>, vector<256x64xf32>
    %cst_7 = arith.constant dense<0.000000e+00> : vector<8x64xf32>
    %18 = tpu.matmul %16, %17, %cst_7 {dimension_numbers = #tpu.dot_dimension_numbers<[1], [0], [0], [1], [0, 0, 1, 1], [], []>} : vector<8x256xf32>, vector<256x64xf32>, vector<8x64xf32> -> vector<8x64xf32>
    %c0_8 = arith.constant 0 : index
    %c0_9 = arith.constant 0 : index
    %19 = vector.load %arg3[%c0_8, %c0_9] : memref<1x64xf32, #tpu.memory_space<vmem>>, vector<1x64xf32>
    %20 = vector.broadcast %19 : vector<1x64xf32> to vector<8x64xf32>
    %21 = arith.addf %18, %20 : vector<8x64xf32>
    %cst_10 = arith.constant 5.000000e-01 : f32
    %22 = vector.broadcast %cst_10 : f32 to vector<8x64xf32>
    %23 = arith.mulf %22, %21 : vector<8x64xf32>
    %cst_11 = arith.constant 0.707106769 : f32
    %24 = vector.broadcast %cst_11 : f32 to vector<8x64xf32>
    %25 = arith.mulf %21, %24 : vector<8x64xf32>
    %26 = math.erf %25 : vector<8x64xf32>
    %cst_12 = arith.constant 1.000000e+00 : f32
    %27 = vector.broadcast %cst_12 : f32 to vector<8x64xf32>
    %28 = arith.addf %27, %26 : vector<8x64xf32>
    %29 = arith.mulf %23, %28 : vector<8x64xf32>
    %c0_13 = arith.constant 0 : index
    %c0_14 = arith.constant 0 : index
    %30 = vector.load %arg4[%c0_13, %c0_14] : memref<64x32xf32, #tpu.memory_space<vmem>>, vector<64x32xf32>
    %cst_15 = arith.constant dense<0.000000e+00> : vector<8x32xf32>
    %31 = tpu.matmul %29, %30, %cst_15 {dimension_numbers = #tpu.dot_dimension_numbers<[1], [0], [0], [1], [0, 0, 1, 1], [], []>} : vector<8x64xf32>, vector<64x32xf32>, vector<8x32xf32> -> vector<8x32xf32>
    %c0_16 = arith.constant 0 : index
    %c0_17 = arith.constant 0 : index
    %32 = vector.load %arg5[%c0_16, %c0_17] : memref<1x32xf32, #tpu.memory_space<vmem>>, vector<1x32xf32>
    %33 = vector.broadcast %32 : vector<1x32xf32> to vector<8x32xf32>
    %34 = arith.addf %31, %33 : vector<8x32xf32>
    %cst_18 = arith.constant 5.000000e-01 : f32
    %35 = vector.broadcast %cst_18 : f32 to vector<8x32xf32>
    %36 = arith.mulf %35, %34 : vector<8x32xf32>
    %cst_19 = arith.constant 0.707106769 : f32
    %37 = vector.broadcast %cst_19 : f32 to vector<8x32xf32>
    %38 = arith.mulf %34, %37 : vector<8x32xf32>
    %39 = math.erf %38 : vector<8x32xf32>
    %cst_20 = arith.constant 1.000000e+00 : f32
    %40 = vector.broadcast %cst_20 : f32 to vector<8x32xf32>
    %41 = arith.addf %40, %39 : vector<8x32xf32>
    %42 = arith.mulf %36, %41 : vector<8x32xf32>
    %c0_21 = arith.constant 0 : index
    %c0_22 = arith.constant 0 : index
    %43 = vector.load %arg6[%c0_21, %c0_22] : memref<1x32xf32, #tpu.memory_space<vmem>>, vector<1x32xf32>
    %44 = vector.broadcast %43 : vector<1x32xf32> to vector<8x32xf32>
    %45 = arith.mulf %42, %44 : vector<8x32xf32>
    %cst_23 = arith.constant dense<0.000000e+00> : vector<8xf32>
    %46 = vector.multi_reduction <add>, %45, %cst_23 [1] : vector<8x32xf32> to vector<8xf32>
    %47 = vector.shape_cast %46 : vector<8xf32> to vector<8x1xf32>
    %48 = tpu.transpose %47, [1, 0] : vector<8x1xf32> -> vector<1x8xf32>
    %c0_24 = arith.constant 0 : index
    %c0_25 = arith.constant 0 : index
    %49 = vector.load %arg7[%c0_24, %c0_25] : memref<1x1xf32, #tpu.memory_space<vmem>>, vector<1x1xf32>
    %50 = vector.broadcast %49 : vector<1x1xf32> to vector<1x8xf32>
    %51 = arith.addf %48, %50 : vector<1x8xf32>
    %cst_26 = arith.constant 5.000000e-01 : f32
    %52 = vector.broadcast %cst_26 : f32 to vector<1x8xf32>
    %53 = arith.mulf %52, %51 : vector<1x8xf32>
    %cst_27 = arith.constant 0.707106769 : f32
    %54 = vector.broadcast %cst_27 : f32 to vector<1x8xf32>
    %55 = arith.mulf %51, %54 : vector<1x8xf32>
    %56 = math.erf %55 : vector<1x8xf32>
    %cst_28 = arith.constant 1.000000e+00 : f32
    %57 = vector.broadcast %cst_28 : f32 to vector<1x8xf32>
    %58 = arith.addf %57, %56 : vector<1x8xf32>
    %59 = arith.mulf %53, %58 : vector<1x8xf32>
    %cst_29 = arith.constant 0.000000e+00 : f32
    %60 = vector.broadcast %cst_29 : f32 to vector<1x8xf32>
    %61 = arith.subf %60, %59 : vector<1x8xf32>
    %62 = math.exp %61 : vector<1x8xf32>
    %cst_30 = arith.constant 1.000000e+00 : f32
    %63 = vector.broadcast %cst_30 : f32 to vector<1x8xf32>
    %64 = arith.addf %63, %62 : vector<1x8xf32>
    %cst_31 = arith.constant 1.000000e+00 : f32
    %65 = vector.broadcast %cst_31 : f32 to vector<1x8xf32>
    %66 = arith.divf %65, %64 : vector<1x8xf32>
    %c0_32 = arith.constant 0 : index
    %c0_33 = arith.constant 0 : index
    %c0_34 = arith.constant 0 : index
    %67 = vector.load %arg8[%c0_32, %c0_33, %c0_34] : memref<1x1x8xf32, #tpu.memory_space<vmem>>, vector<1x1x8xf32>
    %68 = vector.shape_cast %67 : vector<1x1x8xf32> to vector<1x8xf32>
    %69 = vector.shape_cast %66 : vector<1x8xf32> to vector<1x1x8xf32>
    tpu.vector_store %arg8[%c0_32, %c0_33, %c0_34], %69 {strides = array<i32>} : memref<1x1x8xf32, #tpu.memory_space<vmem>>, vector<1x1x8xf32>,
    return
  }
  func.func @transform_0(%arg0: i32) -> (i32, i32) {
    %c0_i32 = arith.constant 0 : i32
    %c0_i32_0 = arith.constant 0 : i32
    return %arg0, %c0_i32 : i32, i32
  }
  func.func @transform_1(%arg0: i32) -> (i32, i32) {
    %c0_i32 = arith.constant 0 : i32
    %c0_i32_0 = arith.constant 0 : i32
    %c0_i32_1 = arith.constant 0 : i32
    return %c0_i32, %c0_i32_0 : i32, i32
  }
  func.func @transform_2(%arg0: i32) -> (i32, i32) {
    %c0_i32 = arith.constant 0 : i32
    %c0_i32_0 = arith.constant 0 : i32
    %c0_i32_1 = arith.constant 0 : i32
    return %c0_i32, %c0_i32_0 : i32, i32
  }
  func.func @transform_3(%arg0: i32) -> (i32, i32) {
    %c0_i32 = arith.constant 0 : i32
    %c0_i32_0 = arith.constant 0 : i32
    %c0_i32_1 = arith.constant 0 : i32
    return %c0_i32, %c0_i32_0 : i32, i32
  }
  func.func @transform_4(%arg0: i32) -> (i32, i32) {
    %c0_i32 = arith.constant 0 : i32
    %c0_i32_0 = arith.constant 0 : i32
    %c0_i32_1 = arith.constant 0 : i32
    return %c0_i32, %c0_i32_0 : i32, i32
  }
  func.func @transform_5(%arg0: i32) -> (i32, i32) {
    %c0_i32 = arith.constant 0 : i32
    %c0_i32_0 = arith.constant 0 : i32
    %c0_i32_1 = arith.constant 0 : i32
    return %c0_i32, %c0_i32_0 : i32, i32
  }
  func.func @transform_6(%arg0: i32) -> (i32, i32) {
    %c0_i32 = arith.constant 0 : i32
    %c0_i32_0 = arith.constant 0 : i32
    %c0_i32_1 = arith.constant 0 : i32
    return %c0_i32, %c0_i32_0 : i32, i32
  }
  func.func @transform_7(%arg0: i32) -> (i32, i32, i32) {
    %c0_i32 = arith.constant 0 : i32
    %c0_i32_0 = arith.constant 0 : i32
    %c0_i32_1 = arith.constant 0 : i32
    return %arg0, %c0_i32, %c0_i32_0 : i32, i32, i32
  }
}

</mosaic_0001>

<llo_original>
// kernel: tpu_custom_call.1
$region0: #{tpu_custom_call.1}
  #allocation0 [shape = 'u32[]', space=smem, size = 0x4, offset = 0x4, fixed_abs, tag = 'smem constant byte address 0x4 - core index']
  #allocation1 [shape = 'u32[144,128]{1,0:T(1,128)}', space=vmem, size = 0x12000, scoped, tag = 'internal scratch']
  #allocation2 [shape = 'f32[1,1]{1,0:T(1,128)S(1)}', space=vmem, size = 0x200, scoped, tag = 'scoped memory for tpu_custom_call.1']
  %s0 = inlined_call_operand.vmem [shape: f32[8,256], index: 0, kind: input, shape index: {}]
  %s1 = inlined_call_operand.vmem [shape: f32[256,64], index: 1, kind: input, shape index: {}]
  %s2 = inlined_call_operand.vmem [shape: f32[1,64], index: 2, kind: input, shape index: {}]
  %s3 = inlined_call_operand.vmem [shape: f32[64,32], index: 3, kind: input, shape index: {}]
  %s4 = inlined_call_operand.vmem [shape: f32[1,32], index: 4, kind: input, shape index: {}]
  %s5 = inlined_call_operand.vmem [shape: f32[1,32], index: 5, kind: input, shape index: {}]
  %s6 = inlined_call_operand.<no memory space> [shape: f32[1,1], index: 6, kind: input, shape index: {}]
  %s7 = inlined_call_operand.hbm [shape: f32[1,1,8], index: 7, kind: output, shape index: {}]
  %s8 = sld [smem:[#allocation0]]
  $region38: #{tpu_custom_call.1} parent=0
    _
  %s10 = ssub.s32 1, %s8
  %s11 = scalar_select 0, %s10, %s8
  %v12 = vstv %s6
  %13 = vst [vmem:[#allocation2] sm:$0x1] %v12
  $region1: #{tpu_custom_call.1} parent=0
    #allocation3 [shape = 'u8[512]{0}', space=vmem, size = 0x400, scoped, tag = 'output window, operand 0, single buffered']
    #allocation4 [shape = 's32[1]{0}', space=sflag, size = 0x4, scoped, tag = 'scoped memory for tpu_custom_call.1']
    %14 = vsyncpa [#allocation4], 0
    // Predicated region
    $region2: #{tpu_custom_call.1} parent=1 // pred_check
      _
    $region3: #{tpu_custom_call.1} parent=1 // pred_check_branch
      %16 = sbr.rel (0) target = $region5
    $region4: #{tpu_custom_call.1} parent=1 // pred_region
      _
    $region5: #{tpu_custom_call.1} parent=1 // pred_fallthru
      _
    // Predicated region
    $region6: #{tpu_custom_call.1} parent=1 // pred_check
      _
    $region7: #{tpu_custom_call.1} parent=1 // pred_check_branch
      %18 = sbr.rel (0) target = $region9
    $region8: #{tpu_custom_call.1} parent=1 // pred_region
      _
    $region9: #{tpu_custom_call.1} parent=1 // pred_fallthru
      _
    // Predicated region
    $region10: #{tpu_custom_call.1} parent=1 // pred_check
      _
    $region11: #{tpu_custom_call.1} parent=1 // pred_check_branch
      %20 = sbr.rel (0) target = $region13
    $region12: #{tpu_custom_call.1} parent=1 // pred_region
      _
    $region13: #{tpu_custom_call.1} parent=1 // pred_fallthru
      _
    // Predicated region
    $region14: #{tpu_custom_call.1} parent=1 // pred_check
      _
    $region15: #{tpu_custom_call.1} parent=1 // pred_check_branch
      %22 = sbr.rel (0) target = $region17
    $region16: #{tpu_custom_call.1} parent=1 // pred_region
      _
    $region17: #{tpu_custom_call.1} parent=1 // pred_fallthru
      _
    // Predicated region
    $region18: #{tpu_custom_call.1} parent=1 // pred_check
      _
    $region19: #{tpu_custom_call.1} parent=1 // pred_check_branch
      %24 = sbr.rel (0) target = $region21
    $region20: #{tpu_custom_call.1} parent=1 // pred_region
      _
    $region21: #{tpu_custom_call.1} parent=1 // pred_fallthru
      _
    // Predicated region
    $region22: #{tpu_custom_call.1} parent=1 // pred_check
      _
    $region23: #{tpu_custom_call.1} parent=1 // pred_check_branch
      %26 = sbr.rel (0) target = $region25
    $region24: #{tpu_custom_call.1} parent=1 // pred_region
      _
    $region25: #{tpu_custom_call.1} parent=1 // pred_fallthru
      _
    // Predicated region
    $region26: #{tpu_custom_call.1} parent=1 // pred_check
      _
    $region27: #{tpu_custom_call.1} parent=1 // pred_check_branch
      %28 = sbr.rel (0) target = $region29
    $region28: #{tpu_custom_call.1} parent=1 // pred_region
      _
    $region29: #{tpu_custom_call.1} parent=1 // pred_fallthru
      _
    %v29 = vld [vmem:[%s0] sm:$0xff]
    %v30 = vld [vmem:[%s0 + $0x8] sm:$0xff]
    %v31 = vadd.f32 %v29, %v30
    %32 = vadd.xlane.f32.xlu0 %v31
    %v33 = vpop.xlane.xlu0 %32
    %v34 = vrcp.pop 256.0
    %v35 = vmul.f32 %v33, %v34
    %v36 = vsub.f32 %v29, %v35
    %v37 = vsub.f32 %v30, %v35
    %v38 = vmul.f32 %v36, %v36
    %v39 = vmul.f32 %v37, %v37
    %v40 = vadd.f32 %v38, %v39
    %41 = vadd.xlane.f32.xlu0 %v40
    %v42 = vpop.xlane.xlu0 %41
    %v43 = vmul.f32 %v42, %v34
    %v44 = vadd.f32 %v43, 1e-05
    %v45 = vrsqrt.pop %v44
    %v46 = vmul.f32 %v36, %v45
    %v47 = vmul.f32 %v37, %v45
    %v48 = vld [vmem:[%s1] sm:$0xff]
    %v49 = vld [vmem:[%s1 + $0x8] sm:$0xff]
    %v50 = vld [vmem:[%s1 + $0x10] sm:$0xff]
    %v51 = vld [vmem:[%s1 + $0x18] sm:$0xff]
    %v52 = vld [vmem:[%s1 + $0x20] sm:$0xff]
    %v53 = vld [vmem:[%s1 + $0x28] sm:$0xff]
    %v54 = vld [vmem:[%s1 + $0x30] sm:$0xff]
    %v55 = vld [vmem:[%s1 + $0x38] sm:$0xff]
    %v56 = vld [vmem:[%s1 + $0x40] sm:$0xff]
    %v57 = vld [vmem:[%s1 + $0x48] sm:$0xff]
    %v58 = vld [vmem:[%s1 + $0x50] sm:$0xff]
    %v59 = vld [vmem:[%s1 + $0x58] sm:$0xff]
    %v60 = vld [vmem:[%s1 + $0x60] sm:$0xff]
    %v61 = vld [vmem:[%s1 + $0x68] sm:$0xff]
    %v62 = vld [vmem:[%s1 + $0x70] sm:$0xff]
    %v63 = vld [vmem:[%s1 + $0x78] sm:$0xff]
    %v64 = vld [vmem:[%s1 + $0x80] sm:$0xff]
    %v65 = vld [vmem:[%s1 + $0x88] sm:$0xff]
    %v66 = vld [vmem:[%s1 + $0x90] sm:$0xff]
    %v67 = vld [vmem:[%s1 + $0x98] sm:$0xff]
    %v68 = vld [vmem:[%s1 + $0xa0] sm:$0xff]
    %v69 = vld [vmem:[%s1 + $0xa8] sm:$0xff]
    %v70 = vld [vmem:[%s1 + $0xb0] sm:$0xff]
    %v71 = vld [vmem:[%s1 + $0xb8] sm:$0xff]
    %v72 = vld [vmem:[%s1 + $0xc0] sm:$0xff]
    %v73 = vld [vmem:[%s1 + $0xc8] sm:$0xff]
    %v74 = vld [vmem:[%s1 + $0xd0] sm:$0xff]
    %v75 = vld [vmem:[%s1 + $0xd8] sm:$0xff]
    %v76 = vld [vmem:[%s1 + $0xe0] sm:$0xff]
    %v77 = vld [vmem:[%s1 + $0xe8] sm:$0xff]
    %v78 = vld [vmem:[%s1 + $0xf0] sm:$0xff]
    %v79 = vld [vmem:[%s1 + $0xf8] sm:$0xff]
    %v80 = vld [vmem:[%s2] sm:$0x1]
    %v82 = vlaneseq
    %v83 = vshrl.u32 %v82, 7
    %v84 = vsub.s32 0, %v83
    %v85 = vrot.slane %v80, %v84
    %87 = vmatprep.subr.mxu0 0.0
    %88 = vmatpush1.msra.mxu0 %v63
    %89 = vmatprep.subr.mxu0 0.0
    %90 = vmatpush1.msra.mxu0 %v62
    %91 = vmatprep.subr.mxu0 0.0
    %92 = vmatpush1.msra.mxu0 %v61
    %93 = vmatprep.subr.mxu0 0.0
    %94 = vmatpush1.msra.mxu0 %v60
    %95 = vmatprep.subr.mxu0 0.0
    %96 = vmatpush1.msra.mxu0 %v59
    %97 = vmatprep.subr.mxu0 0.0
    %98 = vmatpush1.msra.mxu0 %v58
    %99 = vmatprep.subr.mxu0 0.0
    %100 = vmatpush1.msra.mxu0 %v57
    %101 = vmatprep.subr.mxu0 0.0
    %102 = vmatpush1.msra.mxu0 %v56
    %103 = vmatprep.subr.mxu0 0.0
    %104 = vmatpush1.msra.mxu0 %v55
    %105 = vmatprep.subr.mxu0 0.0
    %106 = vmatpush1.msra.mxu0 %v54
    %107 = vmatprep.subr.mxu0 0.0
    %108 = vmatpush1.msra.mxu0 %v53
    %109 = vmatprep.subr.mxu0 0.0
    %110 = vmatpush1.msra.mxu0 %v52
    %111 = vmatprep.subr.mxu0 0.0
    %112 = vmatpush1.msra.mxu0 %v51
    %113 = vmatprep.subr.mxu0 0.0
    %114 = vmatpush1.msra.mxu0 %v50
    %115 = vmatprep.subr.mxu0 0.0
    %116 = vmatpush1.msra.mxu0 %v49
    %117 = vmatprep.subr.mxu0 0.0
    %118 = vmatpush1.msra.mxu0 %v48
    %119 = vmatprep.subr.mxu0 0.0
    %120 = vmatpush2.msra.mxu0 %v79
    %121 = vmatprep.subr.mxu0 0.0
    %122 = vmatpush2.msra.mxu0 %v78
    %123 = vmatprep.subr.mxu0 0.0
    %124 = vmatpush2.msra.mxu0 %v77
    %125 = vmatprep.subr.mxu0 0.0
    %126 = vmatpush2.msra.mxu0 %v76
    %127 = vmatprep.subr.mxu0 0.0
    %128 = vmatpush2.msra.mxu0 %v75
    %129 = vmatprep.subr.mxu0 0.0
    %130 = vmatpush2.msra.mxu0 %v74
    %131 = vmatprep.subr.mxu0 0.0
    %132 = vmatpush2.msra.mxu0 %v73
    %133 = vmatprep.subr.mxu0 0.0
    %134 = vmatpush2.msra.mxu0 %v72
    %135 = vmatprep.subr.mxu0 0.0
    %136 = vmatpush2.msra.mxu0 %v71
    %137 = vmatprep.subr.mxu0 0.0
    %138 = vmatpush2.msra.mxu0 %v70
    %139 = vmatprep.subr.mxu0 0.0
    %140 = vmatpush2.msra.mxu0 %v69
    %141 = vmatprep.subr.mxu0 0.0
    %142 = vmatpush2.msra.mxu0 %v68
    %143 = vmatprep.subr.mxu0 0.0
    %144 = vmatpush2.msra.mxu0 %v67
    %145 = vmatprep.subr.mxu0 0.0
    %146 = vmatpush2.msra.mxu0 %v66
    %147 = vmatprep.subr.mxu0 0.0
    %148 = vmatpush2.msra.mxu0 %v65
    %149 = vmatprep.subr.mxu0 0.0
    %150 = vmatpush2.msra.mxu0 %v64
    %151 = vmatprep.mubr.f32.mxu0 %v47
    %152 = vmatmul.mubr.f32.gmra.mxu0 %v46
    %v153 = vpop.f32.mrf.mxu0
    %v154 = vadd.f32 %v85, %v153
    %v155 = vpop.f32.mrf.mxu0
    %156 = vdwg.mxu0
    %v157 = vmul.f32 %v154, 0.5
    %v158 = vmul.f32 %v154, 0.70710677
    %v159 = verf.f32.pop %v158
    %v160 = vadd.f32 %v159, 1.0
    %v161 = vmul.f32 %v157, %v160
    %v162 = vld [vmem:[%s3] sm:$0xff]
    %v163 = vld [vmem:[%s3 + $0x8] sm:$0xff]
    %v164 = vld [vmem:[%s3 + $0x10] sm:$0xff]
    %v165 = vld [vmem:[%s3 + $0x18] sm:$0xff]
    %v166 = vld [vmem:[%s3 + $0x20] sm:$0xff]
    %v167 = vld [vmem:[%s3 + $0x28] sm:$0xff]
    %v168 = vld [vmem:[%s3 + $0x30] sm:$0xff]
    %v169 = vld [vmem:[%s3 + $0x38] sm:$0xff]
    %v170 = vld [vmem:[%s4] sm:$0x1]
    %v172 = vlaneseq
    %v173 = vshrl.u32 %v172, 7
    %v174 = vsub.s32 0, %v173
    %v175 = vrot.slane %v170, %v174
    %vm177 = vcmask 523264
    %v179 = vsel %vm177, %v161, 0
    %181 = vmatprep.subr.mxu0 0.0
    %182 = vmatpush1.msra.mxu0 0.0
    %183 = vmatprep.subr.mxu0 0.0
    %184 = vmatpush1.msra.mxu0 0.0
    %185 = vmatprep.subr.mxu0 0.0
    %186 = vmatpush1.msra.mxu0 0.0
    %187 = vmatprep.subr.mxu0 0.0
    %188 = vmatpush1.msra.mxu0 0.0
    %189 = vmatprep.subr.mxu0 0.0
    %190 = vmatpush1.msra.mxu0 0.0
    %191 = vmatprep.subr.mxu0 0.0
    %192 = vmatpush1.msra.mxu0 0.0
    %193 = vmatprep.subr.mxu0 0.0
    %194 = vmatpush1.msra.mxu0 0.0
    %195 = vmatprep.subr.mxu0 0.0
    %196 = vmatpush1.msra.mxu0 0.0
    %197 = vmatprep.subr.mxu0 0.0
    %198 = vmatpush1.msra.mxu0 %v169
    %199 = vmatprep.subr.mxu0 0.0
    %200 = vmatpush1.msra.mxu0 %v168
    %201 = vmatprep.subr.mxu0 0.0
    %202 = vmatpush1.msra.mxu0 %v167
    %203 = vmatprep.subr.mxu0 0.0
    %204 = vmatpush1.msra.mxu0 %v166
    %205 = vmatprep.subr.mxu0 0.0
    %206 = vmatpush1.msra.mxu0 %v165
    %207 = vmatprep.subr.mxu0 0.0
    %208 = vmatpush1.msra.mxu0 %v164
    %209 = vmatprep.subr.mxu0 0.0
    %210 = vmatpush1.msra.mxu0 %v163
    %211 = vmatprep.subr.mxu0 0.0
    %212 = vmatpush1.msra.mxu0 %v162
    %213 = vmatprep.subr.mxu0 0.0
    %214 = vmatpush2.msra.mxu0 0.0
    %215 = vmatprep.subr.mxu0 0.0
    %216 = vmatpush2.msra.mxu0 0.0
    %217 = vmatprep.subr.mxu0 0.0
    %218 = vmatpush2.msra.mxu0 0.0
    %219 = vmatprep.subr.mxu0 0.0
    %220 = vmatpush2.msra.mxu0 0.0
    %221 = vmatprep.subr.mxu0 0.0
    %222 = vmatpush2.msra.mxu0 0.0
    %223 = vmatprep.subr.mxu0 0.0
    %224 = vmatpush2.msra.mxu0 0.0
    %225 = vmatprep.subr.mxu0 0.0
    %226 = vmatpush2.msra.mxu0 0.0
    %227 = vmatprep.subr.mxu0 0.0
    %228 = vmatpush2.msra.mxu0 0.0
    %229 = vmatprep.subr.mxu0 0.0
    %230 = vmatpush2.msra.mxu0 0.0
    %231 = vmatprep.subr.mxu0 0.0
    %232 = vmatpush2.msra.mxu0 0.0
    %233 = vmatprep.subr.mxu0 0.0
    %234 = vmatpush2.msra.mxu0 0.0
    %235 = vmatprep.subr.mxu0 0.0
    %236 = vmatpush2.msra.mxu0 0.0
    %237 = vmatprep.subr.mxu0 0.0
    %238 = vmatpush2.msra.mxu0 0.0
    %239 = vmatprep.subr.mxu0 0.0
    %240 = vmatpush2.msra.mxu0 0.0
    %241 = vmatprep.subr.mxu0 0.0
    %242 = vmatpush2.msra.mxu0 0.0
    %243 = vmatprep.subr.mxu0 0.0
    %244 = vmatpush2.msra.mxu0 0.0
    %245 = vmatprep.mubr.f32.mxu0 0.0
    %246 = vmatmul.mubr.f32.gmra.mxu0 %v179
    %v247 = vpop.f32.mrf.mxu0
    %v248 = vadd.f32 %v175, %v247
    %v249 = vpop.f32.mrf.mxu0
    %250 = vdwg.mxu0
    %v251 = vmul.f32 %v248, 0.5
    %v252 = vmul.f32 %v248, 0.70710677
    %v253 = verf.f32.pop %v252
    %v254 = vadd.f32 %v253, 1.0
    %v255 = vmul.f32 %v251, %v254
    %v256 = vld [vmem:[%s5] sm:$0x1]
    %v258 = vlaneseq
    %v259 = vshrl.u32 %v258, 7
    %v260 = vsub.s32 0, %v259
    %v261 = vrot.slane %v256, %v260
    %v263 = vmul.f32 %v255, %v261
    %vm264 = vcmask 261120
    %v265 = vsel %vm264, %v263, 0.0
    %266 = vadd.xlane.f32.xlu0 %v265
    %v267 = vpop.xlane.xlu0 %266
    %268 = vxpose.xlu0.b32.start [1/16] %v267, 128
    %269 = vxpose.xlu0.b32.cont [2/16] 0.0, 128
    %270 = vxpose.xlu0.b32.cont [3/16] 0.0, 128
    %271 = vxpose.xlu0.b32.cont [4/16] 0.0, 128
    %272 = vxpose.xlu0.b32.cont [5/16] 0.0, 128
    %273 = vxpose.xlu0.b32.cont [6/16] 0.0, 128
    %274 = vxpose.xlu0.b32.cont [7/16] 0.0, 128
    %275 = vxpose.xlu0.b32.cont [8/16] 0.0, 128
    %276 = vxpose.xlu0.b32.cont [9/16] 0.0, 128
    %277 = vxpose.xlu0.b32.cont [10/16] 0.0, 128
    %278 = vxpose.xlu0.b32.cont [11/16] 0.0, 128
    %279 = vxpose.xlu0.b32.cont [12/16] 0.0, 128
    %280 = vxpose.xlu0.b32.cont [13/16] 0.0, 128
    %281 = vxpose.xlu0.b32.cont [14/16] 0.0, 128
    %282 = vxpose.xlu0.b32.cont [15/16] 0.0, 128
    %283 = vxpose.xlu0.b32.end [16/16] 0.0, 128
    %v284 = vpop.trf.xlu0
    %v285 = vpop.trf.xlu0
    %v286 = vpop.trf.xlu0
    %v287 = vpop.trf.xlu0
    %v288 = vpop.trf.xlu0
    %v289 = vpop.trf.xlu0
    %v290 = vpop.trf.xlu0
    %v291 = vpop.trf.xlu0
    %v292 = vpop.trf.xlu0
    %v293 = vpop.trf.xlu0
    %v294 = vpop.trf.xlu0
    %v295 = vpop.trf.xlu0
    %v296 = vpop.trf.xlu0
    %v297 = vpop.trf.xlu0
    %v298 = vpop.trf.xlu0
    %v299 = vpop.trf.xlu0
    %v300 = vld [vmem:[#allocation2] sm:$0x1]
    %302 = vset.pattern.permute.xlu0 0
    %303 = vperm.xlu0 %302, %v300
    %v304 = vpop.permute.xlu0 %303
    %v306 = vlaneseq
    %v307 = vshrl.u32 %v306, 7
    %v308 = vsub.s32 0, %v307
    %v309 = vrot.slane %v304, %v308
    %v310 = vadd.f32 %v284, %v309
    %v311 = vmul.f32 %v310, 0.5
    %v312 = vmul.f32 %v310, 0.70710677
    %v313 = verf.f32.pop %v312
    %v314 = vadd.f32 %v313, 1.0
    %v315 = vmul.f32 %v311, %v314
    %v316 = vsub.f32 0.0, %v315
    %v317 = vmul.f32 %v316, 1.442695
    %v318 = vpow.pop %v317
    %v319 = vadd.f32 %v318, 1.0
    %v320 = vrcp.pop %v319
    %v321 = vmul.f32 1.0, %v320
    %vm322 = vcmask 57344
    %323 = vst.msk [vmem:[#allocation3] sm:$0x1] %vm322, %v321
    // Predicated region
    $region30: #{tpu_custom_call.1} parent=1 // pred_check
      _
    $region31: #{tpu_custom_call.1} parent=1 // pred_check_branch
      %325 = sbr.rel (0) target = $region33
    $region32: #{tpu_custom_call.1} parent=1 // pred_region
      %s327 = ssub.s32 16, 16
      %328 = vsyncadd [#allocation4], %s327
      %s330 = sshll.u32 [#allocation3], 4
      %s331 = int_to_ptr.vmem [resolvable:$true] %s330
      %333 = dma.vmem_to_hbm [thread:$0]  %s331, 16, %s7, [#allocation4]
    $region33: #{tpu_custom_call.1} parent=1 // pred_fallthru
      _
    // Predicated region
    $region34: #{tpu_custom_call.1} parent=1 // pred_check
      _
    $region35: #{tpu_custom_call.1} parent=1 // pred_check_branch
      %335 = sbr.rel (0) target = $region37
    $region36: #{tpu_custom_call.1} parent=1 // pred_region
      %336 = dma.done [#allocation4], 16
    $region37: #{tpu_custom_call.1} parent=1 // pred_fallthru
      _
    %337 = vsyncpa [#allocation4], 1

// kernel: tpu_custom_call.1
$region0: #{tpu_custom_call.1}
  #allocation0 [shape = 'u32[]', space=smem, size = 0x4, offset = 0x4, fixed_abs, tag = 'smem constant byte address 0x4 - core index']
  #allocation1 [shape = 'u32[144,128]{1,0:T(1,128)}', space=vmem, size = 0x12000, scoped, tag = 'internal scratch']
  #allocation2 [shape = 'f32[1,1]{1,0:T(1,128)S(1)}', space=vmem, size = 0x200, scoped, tag = 'scoped memory for tpu_custom_call.1']
  %s0 = inlined_call_operand.vmem [shape: f32[8,256], index: 0, kind: input, shape index: {}]
  %s1 = inlined_call_operand.vmem [shape: f32[256,64], index: 1, kind: input, shape index: {}]
  %s2 = inlined_call_operand.vmem [shape: f32[1,64], index: 2, kind: input, shape index: {}]
  %s3 = inlined_call_operand.vmem [shape: f32[64,32], index: 3, kind: input, shape index: {}]
  %s4 = inlined_call_operand.vmem [shape: f32[1,32], index: 4, kind: input, shape index: {}]
  %s5 = inlined_call_operand.vmem [shape: f32[1,32], index: 5, kind: input, shape index: {}]
  %s6 = inlined_call_operand.<no memory space> [shape: f32[1,1], index: 6, kind: input, shape index: {}]
  %s7 = inlined_call_operand.hbm [shape: f32[1,1,8], index: 7, kind: output, shape index: {}]
  %s8 = sld [smem:[#allocation0]]
  $region38: #{tpu_custom_call.1} parent=0
    _
  %s10 = ssub.s32 1, %s8
  %s11 = scalar_select 0, %s10, %s8
  %v12 = vstv %s6
  %13 = vst [vmem:[#allocation2] sm:$0x1] %v12
  $region1: #{tpu_custom_call.1} parent=0
    #allocation3 [shape = 'u8[512]{0}', space=vmem, size = 0x400, scoped, tag = 'output window, operand 0, single buffered']
    #allocation4 [shape = 's32[1]{0}', space=sflag, size = 0x4, scoped, tag = 'scoped memory for tpu_custom_call.1']
    %14 = vsyncpa [#allocation4], 0
    // Predicated region
    $region2: #{tpu_custom_call.1} parent=1 // pred_check
      _
    $region3: #{tpu_custom_call.1} parent=1 // pred_check_branch
      %16 = sbr.rel (0) target = $region5
    $region4: #{tpu_custom_call.1} parent=1 // pred_region
      _
    $region5: #{tpu_custom_call.1} parent=1 // pred_fallthru
      _
    // Predicated region
    $region6: #{tpu_custom_call.1} parent=1 // pred_check
      _
    $region7: #{tpu_custom_call.1} parent=1 // pred_check_branch
      %18 = sbr.rel (0) target = $region9
    $region8: #{tpu_custom_call.1} parent=1 // pred_region
      _
    $region9: #{tpu_custom_call.1} parent=1 // pred_fallthru
      _
    // Predicated region
    $region10: #{tpu_custom_call.1} parent=1 // pred_check
      _
    $region11: #{tpu_custom_call.1} parent=1 // pred_check_branch
      %20 = sbr.rel (0) target = $region13
    $region12: #{tpu_custom_call.1} parent=1 // pred_region
      _
    $region13: #{tpu_custom_call.1} parent=1 // pred_fallthru
      _
    // Predicated region
    $region14: #{tpu_custom_call.1} parent=1 // pred_check
      _
    $region15: #{tpu_custom_call.1} parent=1 // pred_check_branch
      %22 = sbr.rel (0) target = $region17
    $region16: #{tpu_custom_call.1} parent=1 // pred_region
      _
    $region17: #{tpu_custom_call.1} parent=1 // pred_fallthru
      _
    // Predicated region
    $region18: #{tpu_custom_call.1} parent=1 // pred_check
      _
    $region19: #{tpu_custom_call.1} parent=1 // pred_check_branch
      %24 = sbr.rel (0) target = $region21
    $region20: #{tpu_custom_call.1} parent=1 // pred_region
      _
    $region21: #{tpu_custom_call.1} parent=1 // pred_fallthru
      _
    // Predicated region
    $region22: #{tpu_custom_call.1} parent=1 // pred_check
      _
    $region23: #{tpu_custom_call.1} parent=1 // pred_check_branch
      %26 = sbr.rel (0) target = $region25
    $region24: #{tpu_custom_call.1} parent=1 // pred_region
      _
    $region25: #{tpu_custom_call.1} parent=1 // pred_fallthru
      _
    // Predicated region
    $region26: #{tpu_custom_call.1} parent=1 // pred_check
      _
    $region27: #{tpu_custom_call.1} parent=1 // pred_check_branch
      %28 = sbr.rel (0) target = $region29
    $region28: #{tpu_custom_call.1} parent=1 // pred_region
      _
    $region29: #{tpu_custom_call.1} parent=1 // pred_fallthru
      _
    %v29 = vld [vmem:[%s0] sm:$0xff]
    %v30 = vld [vmem:[%s0 + $0x8] sm:$0xff]
    %v31 = vadd.f32 %v29, %v30
    %32 = vadd.xlane.f32.xlu0 %v31
    %v33 = vpop.xlane.xlu0 %32
    %v34 = vrcp.pop 256.0
    %v35 = vmul.f32 %v33, %v34
    %v36 = vsub.f32 %v29, %v35
    %v37 = vsub.f32 %v30, %v35
    %v38 = vmul.f32 %v36, %v36
    %v39 = vmul.f32 %v37, %v37
    %v40 = vadd.f32 %v38, %v39
    %41 = vadd.xlane.f32.xlu0 %v40
    %v42 = vpop.xlane.xlu0 %41
    %v43 = vmul.f32 %v42, %v34
    %v44 = vadd.f32 %v43, 1e-05
    %v45 = vrsqrt.pop %v44
    %v46 = vmul.f32 %v36, %v45
    %v47 = vmul.f32 %v37, %v45
    %v48 = vld [vmem:[%s1] sm:$0xff]
    %v49 = vld [vmem:[%s1 + $0x8] sm:$0xff]
    %v50 = vld [vmem:[%s1 + $0x10] sm:$0xff]
    %v51 = vld [vmem:[%s1 + $0x18] sm:$0xff]
    %v52 = vld [vmem:[%s1 + $0x20] sm:$0xff]
    %v53 = vld [vmem:[%s1 + $0x28] sm:$0xff]
    %v54 = vld [vmem:[%s1 + $0x30] sm:$0xff]
    %v55 = vld [vmem:[%s1 + $0x38] sm:$0xff]
    %v56 = vld [vmem:[%s1 + $0x40] sm:$0xff]
    %v57 = vld [vmem:[%s1 + $0x48] sm:$0xff]
    %v58 = vld [vmem:[%s1 + $0x50] sm:$0xff]
    %v59 = vld [vmem:[%s1 + $0x58] sm:$0xff]
    %v60 = vld [vmem:[%s1 + $0x60] sm:$0xff]
    %v61 = vld [vmem:[%s1 + $0x68] sm:$0xff]
    %v62 = vld [vmem:[%s1 + $0x70] sm:$0xff]
    %v63 = vld [vmem:[%s1 + $0x78] sm:$0xff]
    %v64 = vld [vmem:[%s1 + $0x80] sm:$0xff]
    %v65 = vld [vmem:[%s1 + $0x88] sm:$0xff]
    %v66 = vld [vmem:[%s1 + $0x90] sm:$0xff]
    %v67 = vld [vmem:[%s1 + $0x98] sm:$0xff]
    %v68 = vld [vmem:[%s1 + $0xa0] sm:$0xff]
    %v69 = vld [vmem:[%s1 + $0xa8] sm:$0xff]
    %v70 = vld [vmem:[%s1 + $0xb0] sm:$0xff]
    %v71 = vld [vmem:[%s1 + $0xb8] sm:$0xff]
    %v72 = vld [vmem:[%s1 + $0xc0] sm:$0xff]
    %v73 = vld [vmem:[%s1 + $0xc8] sm:$0xff]
    %v74 = vld [vmem:[%s1 + $0xd0] sm:$0xff]
    %v75 = vld [vmem:[%s1 + $0xd8] sm:$0xff]
    %v76 = vld [vmem:[%s1 + $0xe0] sm:$0xff]
    %v77 = vld [vmem:[%s1 + $0xe8] sm:$0xff]
    %v78 = vld [vmem:[%s1 + $0xf0] sm:$0xff]
    %v79 = vld [vmem:[%s1 + $0xf8] sm:$0xff]
    %v80 = vld [vmem:[%s2] sm:$0x1]
    %v82 = vlaneseq
    %v83 = vshrl.u32 %v82, 7
    %v84 = vsub.s32 0, %v83
    %v85 = vrot.slane %v80, %v84
    %87 = vmatprep.subr.mxu0 0.0
    %88 = vmatpush1.msra.mxu0 %v63
    %89 = vmatprep.subr.mxu0 0.0
    %90 = vmatpush1.msra.mxu0 %v62
    %91 = vmatprep.subr.mxu0 0.0
    %92 = vmatpush1.msra.mxu0 %v61
    %93 = vmatprep.subr.mxu0 0.0
    %94 = vmatpush1.msra.mxu0 %v60
    %95 = vmatprep.subr.mxu0 0.0
    %96 = vmatpush1.msra.mxu0 %v59
    %97 = vmatprep.subr.mxu0 0.0
    %98 = vmatpush1.msra.mxu0 %v58
    %99 = vmatprep.subr.mxu0 0.0
    %100 = vmatpush1.msra.mxu0 %v57
    %101 = vmatprep.subr.mxu0 0.0
    %102 = vmatpush1.msra.mxu0 %v56
    %103 = vmatprep.subr.mxu0 0.0
    %104 = vmatpush1.msra.mxu0 %v55
    %105 = vmatprep.subr.mxu0 0.0
    %106 = vmatpush1.msra.mxu0 %v54
    %107 = vmatprep.subr.mxu0 0.0
    %108 = vmatpush1.msra.mxu0 %v53
    %109 = vmatprep.subr.mxu0 0.0
    %110 = vmatpush1.msra.mxu0 %v52
    %111 = vmatprep.subr.mxu0 0.0
    %112 = vmatpush1.msra.mxu0 %v51
    %113 = vmatprep.subr.mxu0 0.0
    %114 = vmatpush1.msra.mxu0 %v50
    %115 = vmatprep.subr.mxu0 0.0
    %116 = vmatpush1.msra.mxu0 %v49
    %117 = vmatprep.subr.mxu0 0.0
    %118 = vmatpush1.msra.mxu0 %v48
    %119 = vmatprep.subr.mxu0 0.0
    %120 = vmatpush2.msra.mxu0 %v79
    %121 = vmatprep.subr.mxu0 0.0
    %122 = vmatpush2.msra.mxu0 %v78
    %123 = vmatprep.subr.mxu0 0.0
    %124 = vmatpush2.msra.mxu0 %v77
    %125 = vmatprep.subr.mxu0 0.0
    %126 = vmatpush2.msra.mxu0 %v76
    %127 = vmatprep.subr.mxu0 0.0
    %128 = vmatpush2.msra.mxu0 %v75
    %129 = vmatprep.subr.mxu0 0.0
    %130 = vmatpush2.msra.mxu0 %v74
    %131 = vmatprep.subr.mxu0 0.0
    %132 = vmatpush2.msra.mxu0 %v73
    %133 = vmatprep.subr.mxu0 0.0
    %134 = vmatpush2.msra.mxu0 %v72
    %135 = vmatprep.subr.mxu0 0.0
    %136 = vmatpush2.msra.mxu0 %v71
    %137 = vmatprep.subr.mxu0 0.0
    %138 = vmatpush2.msra.mxu0 %v70
    %139 = vmatprep.subr.mxu0 0.0
    %140 = vmatpush2.msra.mxu0 %v69
    %141 = vmatprep.subr.mxu0 0.0
    %142 = vmatpush2.msra.mxu0 %v68
    %143 = vmatprep.subr.mxu0 0.0
    %144 = vmatpush2.msra.mxu0 %v67
    %145 = vmatprep.subr.mxu0 0.0
    %146 = vmatpush2.msra.mxu0 %v66
    %147 = vmatprep.subr.mxu0 0.0
    %148 = vmatpush2.msra.mxu0 %v65
    %149 = vmatprep.subr.mxu0 0.0
    %150 = vmatpush2.msra.mxu0 %v64
    %151 = vmatprep.mubr.f32.mxu0 %v47
    %152 = vmatmul.mubr.f32.gmra.mxu0 %v46
    %v153 = vpop.f32.mrf.mxu0
    %v154 = vadd.f32 %v85, %v153
    %v155 = vpop.f32.mrf.mxu0
    %156 = vdwg.mxu0
    %v157 = vmul.f32 %v154, 0.5
    %v158 = vmul.f32 %v154, 0.70710677
    %v159 = verf.f32.pop %v158
    %v160 = vadd.f32 %v159, 1.0
    %v161 = vmul.f32 %v157, %v160
    %v162 = vld [vmem:[%s3] sm:$0xff]
    %v163 = vld [vmem:[%s3 + $0x8] sm:$0xff]
    %v164 = vld [vmem:[%s3 + $0x10] sm:$0xff]
    %v165 = vld [vmem:[%s3 + $0x18] sm:$0xff]
    %v166 = vld [vmem:[%s3 + $0x20] sm:$0xff]
    %v167 = vld [vmem:[%s3 + $0x28] sm:$0xff]
    %v168 = vld [vmem:[%s3 + $0x30] sm:$0xff]
    %v169 = vld [vmem:[%s3 + $0x38] sm:$0xff]
    %v170 = vld [vmem:[%s4] sm:$0x1]
    %v172 = vlaneseq
    %v173 = vshrl.u32 %v172, 7
    %v174 = vsub.s32 0, %v173
    %v175 = vrot.slane %v170, %v174
    %vm177 = vcmask 523264
    %v179 = vsel %vm177, %v161, 0
    %181 = vmatprep.subr.mxu0 0.0
    %182 = vmatpush1.msra.mxu0 0.0
    %183 = vmatprep.subr.mxu0 0.0
    %184 = vmatpush1.msra.mxu0 0.0
    %185 = vmatprep.subr.mxu0 0.0
    %186 = vmatpush1.msra.mxu0 0.0
    %187 = vmatprep.subr.mxu0 0.0
    %188 = vmatpush1.msra.mxu0 0.0
    %189 = vmatprep.subr.mxu0 0.0
    %190 = vmatpush1.msra.mxu0 0.0
    %191 = vmatprep.subr.mxu0 0.0
    %192 = vmatpush1.msra.mxu0 0.0
    %193 = vmatprep.subr.mxu0 0.0
    %194 = vmatpush1.msra.mxu0 0.0
    %195 = vmatprep.subr.mxu0 0.0
    %196 = vmatpush1.msra.mxu0 0.0
    %197 = vmatprep.subr.mxu0 0.0
    %198 = vmatpush1.msra.mxu0 %v169
    %199 = vmatprep.subr.mxu0 0.0
    %200 = vmatpush1.msra.mxu0 %v168
    %201 = vmatprep.subr.mxu0 0.0
    %202 = vmatpush1.msra.mxu0 %v167
    %203 = vmatprep.subr.mxu0 0.0
    %204 = vmatpush1.msra.mxu0 %v166
    %205 = vmatprep.subr.mxu0 0.0
    %206 = vmatpush1.msra.mxu0 %v165
    %207 = vmatprep.subr.mxu0 0.0
    %208 = vmatpush1.msra.mxu0 %v164
    %209 = vmatprep.subr.mxu0 0.0
    %210 = vmatpush1.msra.mxu0 %v163
    %211 = vmatprep.subr.mxu0 0.0
    %212 = vmatpush1.msra.mxu0 %v162
    %213 = vmatprep.subr.mxu0 0.0
    %214 = vmatpush2.msra.mxu0 0.0
    %215 = vmatprep.subr.mxu0 0.0
    %216 = vmatpush2.msra.mxu0 0.0
    %217 = vmatprep.subr.mxu0 0.0
    %218 = vmatpush2.msra.mxu0 0.0
    %219 = vmatprep.subr.mxu0 0.0
    %220 = vmatpush2.msra.mxu0 0.0
    %221 = vmatprep.subr.mxu0 0.0
    %222 = vmatpush2.msra.mxu0 0.0
    %223 = vmatprep.subr.mxu0 0.0
    %224 = vmatpush2.msra.mxu0 0.0
    %225 = vmatprep.subr.mxu0 0.0
    %226 = vmatpush2.msra.mxu0 0.0
    %227 = vmatprep.subr.mxu0 0.0
    %228 = vmatpush2.msra.mxu0 0.0
    %229 = vmatprep.subr.mxu0 0.0
    %230 = vmatpush2.msra.mxu0 0.0
    %231 = vmatprep.subr.mxu0 0.0
    %232 = vmatpush2.msra.mxu0 0.0
    %233 = vmatprep.subr.mxu0 0.0
    %234 = vmatpush2.msra.mxu0 0.0
    %235 = vmatprep.subr.mxu0 0.0
    %236 = vmatpush2.msra.mxu0 0.0
    %237 = vmatprep.subr.mxu0 0.0
    %238 = vmatpush2.msra.mxu0 0.0
    %239 = vmatprep.subr.mxu0 0.0
    %240 = vmatpush2.msra.mxu0 0.0
    %241 = vmatprep.subr.mxu0 0.0
    %242 = vmatpush2.msra.mxu0 0.0
    %243 = vmatprep.subr.mxu0 0.0
    %244 = vmatpush2.msra.mxu0 0.0
    %245 = vmatprep.mubr.f32.mxu0 0.0
    %246 = vmatmul.mubr.f32.gmra.mxu0 %v179
    %v247 = vpop.f32.mrf.mxu0
    %v248 = vadd.f32 %v175, %v247
    %v249 = vpop.f32.mrf.mxu0
    %250 = vdwg.mxu0
    %v251 = vmul.f32 %v248, 0.5
    %v252 = vmul.f32 %v248, 0.70710677
    %v253 = verf.f32.pop %v252
    %v254 = vadd.f32 %v253, 1.0
    %v255 = vmul.f32 %v251, %v254
    %v256 = vld [vmem:[%s5] sm:$0x1]
    %v258 = vlaneseq
    %v259 = vshrl.u32 %v258, 7
    %v260 = vsub.s32 0, %v259
    %v261 = vrot.slane %v256, %v260
    %v263 = vmul.f32 %v255, %v261
    %vm264 = vcmask 261120
    %v265 = vsel %vm264, %v263, 0.0
    %266 = vadd.xlane.f32.xlu0 %v265
    %v267 = vpop.xlane.xlu0 %266
    %268 = vxpose.xlu0.b32.start [1/16] %v267, 128
    %269 = vxpose.xlu0.b32.cont [2/16] 0.0, 128
    %270 = vxpose.xlu0.b32.cont [3/16] 0.0, 128
    %271 = vxpose.xlu0.b32.cont [4/16] 0.0, 128
    %272 = vxpose.xlu0.b32.cont [5/16] 0.0, 128
    %273 = vxpose.xlu0.b32.cont [6/16] 0.0, 128
    %274 = vxpose.xlu0.b32.cont [7/16] 0.0, 128
    %275 = vxpose.xlu0.b32.cont [8/16] 0.0, 128
    %276 = vxpose.xlu0.b32.cont [9/16] 0.0, 128
    %277 = vxpose.xlu0.b32.cont [10/16] 0.0, 128
    %278 = vxpose.xlu0.b32.cont [11/16] 0.0, 128
    %279 = vxpose.xlu0.b32.cont [12/16] 0.0, 128
    %280 = vxpose.xlu0.b32.cont [13/16] 0.0, 128
    %281 = vxpose.xlu0.b32.cont [14/16] 0.0, 128
    %282 = vxpose.xlu0.b32.cont [15/16] 0.0, 128
    %283 = vxpose.xlu0.b32.end [16/16] 0.0, 128
    %v284 = vpop.trf.xlu0
    %v285 = vpop.trf.xlu0
    %v286 = vpop.trf.xlu0
    %v287 = vpop.trf.xlu0
    %v288 = vpop.trf.xlu0
    %v289 = vpop.trf.xlu0
    %v290 = vpop.trf.xlu0
    %v291 = vpop.trf.xlu0
    %v292 = vpop.trf.xlu0
    %v293 = vpop.trf.xlu0
    %v294 = vpop.trf.xlu0
    %v295 = vpop.trf.xlu0
    %v296 = vpop.trf.xlu0
    %v297 = vpop.trf.xlu0
    %v298 = vpop.trf.xlu0
    %v299 = vpop.trf.xlu0
    %v300 = vld [vmem:[#allocation2] sm:$0x1]
    %302 = vset.pattern.permute.xlu0 0
    %303 = vperm.xlu0 %302, %v300
    %v304 = vpop.permute.xlu0 %303
    %v306 = vlaneseq
    %v307 = vshrl.u32 %v306, 7
    %v308 = vsub.s32 0, %v307
    %v309 = vrot.slane %v304, %v308
    %v310 = vadd.f32 %v284, %v309
    %v311 = vmul.f32 %v310, 0.5
    %v312 = vmul.f32 %v310, 0.70710677
    %v313 = verf.f32.pop %v312
    %v314 = vadd.f32 %v313, 1.0
    %v315 = vmul.f32 %v311, %v314
    %v316 = vsub.f32 0.0, %v315
    %v317 = vmul.f32 %v316, 1.442695
    %v318 = vpow.pop %v317
    %v319 = vadd.f32 %v318, 1.0
    %v320 = vrcp.pop %v319
    %v321 = vmul.f32 1.0, %v320
    %vm322 = vcmask 57344
    %323 = vst.msk [vmem:[#allocation3] sm:$0x1] %vm322, %v321
    // Predicated region
    $region30: #{tpu_custom_call.1} parent=1 // pred_check
      _
    $region31: #{tpu_custom_call.1} parent=1 // pred_check_branch
      %325 = sbr.rel (0) target = $region33
    $region32: #{tpu_custom_call.1} parent=1 // pred_region
      %s327 = ssub.s32 16, 16
      %328 = vsyncadd [#allocation4], %s327
      %s330 = sshll.u32 [#allocation3], 4
      %s331 = int_to_ptr.vmem [resolvable:$true] %s330
      %333 = dma.vmem_to_hbm [thread:$0]  %s331, 16, %s7, [#allocation4]
    $region33: #{tpu_custom_call.1} parent=1 // pred_fallthru
      _
    // Predicated region
    $region34: #{tpu_custom_call.1} parent=1 // pred_check
      _
    $region35: #{tpu_custom_call.1} parent=1 // pred_check_branch
      %335 = sbr.rel (0) target = $region37
    $region36: #{tpu_custom_call.1} parent=1 // pred_region
      %336 = dma.done [#allocation4], 16
    $region37: #{tpu_custom_call.1} parent=1 // pred_fallthru
      _
    %337 = vsyncpa [#allocation4], 1

</llo_original>
